<compile_context>
chip_gen: v7x
topology: tpu7x:2x2x1
jax: 0.10.0
libtpu: 0.0.40
codegen_flags: <defaults>
</compile_context>

<pallas_src>
import jax
import jax.numpy as jnp
from jax.experimental import pallas as pl
from jax.experimental.pallas import tpu as pltpu

MiB = 1024 * 1024


def _round_up(n: int, m: int) -> int:
    return -(-n // m) * m


def _round_down(n: int, m: int) -> int:
    return (n // m) * m


# ---------------------------------------------------------------------------
# Kernel: one (row-tile i, ff-tile k) grid step of  relu(x @ W1 + b1) @ W2 + b2
# ---------------------------------------------------------------------------
def ffn_kernel(x_ref, w1_ref, b1_ref, w2_ref, b2_ref, o_ref, acc_ref):
    k = pl.program_id(1)

    @pl.when(k == 0)
    def _init():
        acc_ref[...] = jnp.zeros_like(acc_ref)

    # First matmul on the current d_ff slab: (tm, d_model) @ (d_model, tf), f32.
    h = jnp.dot(x_ref[...], w1_ref[...], preferred_element_type=jnp.float32)
    h = jnp.maximum(h + b1_ref[...], 0.0)  # bias + ReLU

    # Second matmul accumulates the partial output: (tm, tf) @ (tf, d_out_p).
    acc_ref[...] += jnp.dot(h.astype(w2_ref.dtype), w2_ref[...],
                            preferred_element_type=jnp.float32)

    @pl.when(k == pl.num_programs(1) - 1)
    def _finalize():
        o_ref[...] = (acc_ref[...] + b2_ref[...]).astype(o_ref.dtype)


# ---------------------------------------------------------------------------
# Hardware-aware sizing helpers
# ---------------------------------------------------------------------------
def _tpu_vmem_and_cores():
    """Return (physical VMEM bytes per core, # TensorCores sharing the grid)."""
    vmem = 64 * MiB  # conservative fallback (v7x per-TC size)
    cores = 1
    try:
        info = pltpu.get_tpu_info()
        v = getattr(info, "vmem_capacity_bytes", None)
        if v:
            vmem = int(v)
            for name in ("num_cores", "cores_per_chip", "tensorcores_per_chip",
                         "num_tensorcores"):
                c = getattr(info, name, None)
                if c:
                    cores = max(1, min(2, int(c)))
                    break
            else:
                # Heuristic: 64 MiB/TC chips (v7x) have 2 TCs per chip.
                cores = 2 if vmem <= 64 * MiB else 1
    except Exception:
        pass
    return vmem, cores


def _vmem_budget_and_limit(physical: int):
    # ~0.75x physical, minus headroom for Mosaic internal scratch.
    budget = max(16 * MiB, int(physical * 0.75) - 4 * MiB)
    limit = min(physical - 8 * MiB, budget + 12 * MiB)
    return budget, limit


def _tf_candidates(d_ff: int):
    """Pad-free d_ff tile sizes: 128-multiples dividing d_ff, plus d_ff itself."""
    cands = {d_ff}
    c = 128
    while c < d_ff:
        if d_ff % c == 0:
            cands.add(c)
        c += 128
    return sorted(cands, reverse=True)


# ---------------------------------------------------------------------------
# Wrapper
# ---------------------------------------------------------------------------
def feed_forward(x, w1, b1, w2, b2, *, block_m=512, block_ff=512,
                 compute_dtype=None, vmem_budget_bytes=None,
                 vmem_limit_bytes=None):
    """FeedForward forward pass: relu(x @ W1 + b1) @ W2 + b2.

    x : (B, S, d_model)
    w1: (d_model, d_ff)   b1: (d_ff,)    (weights transposed vs. torch layout)
    w2: (d_ff, d_out)     b2: (d_out,)
    compute_dtype: optional MXU operand dtype (pass jnp.bfloat16 AND store the
      params in bf16 so the casts are no-ops); accumulation is always f32.
    """
    B, S, d_model = x.shape
    d_ff = w1.shape[1]
    d_out = w2.shape[1]
    M = B * S
    out_dtype = x.dtype

    if compute_dtype is not None:
        # NOTE: if params are not already stored in compute_dtype this cast is a
        # full HBM pass per call — store the params in compute_dtype instead.
        x = x.astype(compute_dtype)
        w1 = w1.astype(compute_dtype)
        b1 = b1.astype(compute_dtype)
        w2 = w2.astype(compute_dtype)
        b2 = b2.astype(compute_dtype)

    x2 = x.reshape(M, d_model)
    b1_2 = b1.reshape(1, d_ff)
    b2_2 = b2.reshape(1, d_out)

    xs = x2.dtype.itemsize
    ws = w1.dtype.itemsize
    os_ = jnp.dtype(out_dtype).itemsize
    # Sub-32-bit operands pack along sublanes: align row tiles accordingly.
    row_align = 8 if xs >= 4 else (16 if xs == 2 else 32)

    physical_vmem, num_cores = _tpu_vmem_and_cores()
    budget, limit = _vmem_budget_and_limit(physical_vmem)
    if vmem_budget_bytes is not None:
        budget = int(vmem_budget_bytes)
    if vmem_limit_bytes is not None:
        limit = int(vmem_limit_bytes)

    # --- Lane-dense output: pad d_out to 128 only when needed (no-op for the
    #     usual d_out == d_model multiple-of-128 case). ---
    d_out_p = _round_up(d_out, 128)
    if d_out_p != d_out:
        w2 = jnp.pad(w2, ((0, 0), (0, d_out_p - d_out)))
        b2_2 = jnp.pad(b2_2, ((0, 0), (0, d_out_p - d_out)))

    # --- Row (M) tile. ---
    tm = min(block_m, M)
    if tm < M:
        tm = max(row_align, _round_down(tm, row_align))
    # v7x megacore: make sure the "parallel" row axis has >= num_cores tiles.
    if num_cores >= 2 and M >= num_cores * 256:
        tm = min(tm, max(256, _round_up(-(-M // num_cores), 256)))

    # --- FF (reduction) tile: prefer a size that divides d_ff (pad-free). ---
    cands = _tf_candidates(d_ff)
    fitting = [c for c in cands if c <= max(block_ff, 128)]
    tf = fitting[0] if fitting else cands[-1]

    # --- Conservative double-buffered working-set model (bytes in VMEM). ---
    def vmem_bytes(tm_, tf_, wbuf_):
        return (2 * tm_ * d_model * xs               # x row tile (double-buffered)
                + wbuf_ * d_model * tf_ * ws         # W1 column slab
                + wbuf_ * 8 * tf_ * ws               # b1 slab (8-sublane padded)
                + wbuf_ * tf_ * d_out_p * ws         # W2 row slab
                + 2 * 8 * d_out_p * ws               # b2
                + 2 * tm_ * d_out_p * os_            # output tile
                + tm_ * d_out_p * 4                  # f32 accumulator scratch
                + tm_ * tf_ * (4 + ws))              # h intermediate (+ cast copy)

    def _next_tf(cur, floor):
        smaller = [c for c in cands if floor <= c < cur]
        return smaller[0] if smaller else None

    # Shrink tm first (down to 256), then tf (down to 256), then tm, then tf:
    # keeping tf >= 256 keeps the second matmul's contracting dim MXU-friendly.
    while vmem_bytes(tm, tf, 2) > budget:
        if tm > 256:
            tm = max(256, max(row_align, _round_down(tm // 2, row_align)))
        elif (nt := _next_tf(tf, 256)) is not None:
            tf = nt
        elif tm > row_align:
            tm = max(row_align, _round_down(tm // 2, row_align))
        elif (nt := _next_tf(tf, 128)) is not None:
            tf = nt
        else:
            break

    # Rare fallback: d_ff has no 128-multiple divisor and is too big un-tiled.
    if vmem_bytes(tm, tf, 2) > budget and d_ff % 128 != 0 and d_ff > 256:
        tf = 256 if vmem_bytes(tm, 256, 2) <= budget else 128

    # Pad d_ff to a multiple of tf (a no-op for the dividing tf chosen above).
    d_ff_p = _round_up(d_ff, tf)
    if d_ff_p != d_ff:
        w1 = jnp.pad(w1, ((0, 0), (0, d_ff_p - d_ff)))
        b1_2 = jnp.pad(b1_2, ((0, 0), (0, d_ff_p - d_ff)))  # pad MUST stay 0
        w2 = jnp.pad(w2, ((0, d_ff_p - d_ff), (0, 0)))

    grid_m = -(-M // tm)
    grid_k = d_ff_p // tf
    grid = (grid_m, grid_k)

    # Triple-buffer the streamed weight slabs on 128 MiB-VMEM chips (v5e/v6e)
    # when the budget allows; on v7x the extra buffer just burns scarce VMEM.
    wbuf = 2
    if physical_vmem >= 128 * MiB and grid_k >= 3 and vmem_bytes(tm, tf, 3) <= budget:
        wbuf = 3

    flops = 2 * M * d_model * d_ff + 2 * M * d_ff * d_out
    # Honest HBM estimate: W1/W2/b1/b2 are re-streamed once per row tile; x is
    # read once (its block index does not depend on k).
    bytes_accessed = int(
        M * d_model * xs + M * d_out * os_
        + grid_m * (d_model * d_ff_p * ws + d_ff_p * ws
                    + d_ff_p * d_out_p * ws + d_out_p * ws))

    # TODO(synk): for very large d_model (>= ~8k) add a third (innermost)
    # reduction axis over d_model with an h-accumulator, so x/W1 tiles no longer
    # scale with full d_model; d_model is held un-tiled here.
    def _run(wbuf_):
        buf_kwargs = {} if wbuf_ == 2 else dict(pipeline_mode=pl.Buffered(wbuf_))
        in_specs = [
            # x block index is constant across k -> Pallas reuses the row tile
            # across the whole reduction (do not make this depend on k).
            pl.BlockSpec((tm, d_model), lambda i, k: (i, 0)),
            pl.BlockSpec((d_model, tf), lambda i, k: (0, k), **buf_kwargs),
            pl.BlockSpec((1, tf), lambda i, k: (0, k)),
            pl.BlockSpec((tf, d_out_p), lambda i, k: (k, 0), **buf_kwargs),
            pl.BlockSpec((1, d_out_p), lambda i, k: (0, 0)),
        ]
        return pl.pallas_call(
            ffn_kernel,
            out_shape=jax.ShapeDtypeStruct((M, d_out_p), out_dtype),
            grid_spec=pltpu.PrefetchScalarGridSpec(
                num_scalar_prefetch=0,
                grid=grid,
                in_specs=in_specs,
                out_specs=pl.BlockSpec((tm, d_out_p), lambda i, k: (i, 0)),
                scratch_shapes=[pltpu.VMEM((tm, d_out_p), jnp.float32)],
            ),
            compiler_params=pltpu.CompilerParams(
                dimension_semantics=("parallel", "arbitrary"),
                vmem_limit_bytes=int(limit),
            ),
            cost_estimate=pl.CostEstimate(
                flops=flops, transcendentals=0, bytes_accessed=bytes_accessed),
        )(x2, w1, b1_2, w2, b2_2)

    try:
        out_p = _run(wbuf)
    except Exception:
        if wbuf == 2:
            raise
        out_p = _run(2)  # fall back to default double-buffering

    out = out_p[:, :d_out] if d_out_p != d_out else out_p
    return out.reshape(B, S, d_out)


def init_params(key, d_model, d_ff, dtype=jnp.float32):
    # Mimic nn.Linear default init: U(-1/sqrt(fan_in), 1/sqrt(fan_in)).
    k1, k2, k3, k4 = jax.random.split(key, 4)
    b1v = 1.0 / (d_model ** 0.5)
    b2v = 1.0 / (d_ff ** 0.5)
    # Stored transposed relative to PyTorch's (out_features, in_features) layout.
    w1 = jax.random.uniform(k1, (d_model, d_ff), dtype, -b1v, b1v)
    b1 = jax.random.uniform(k2, (d_ff,), dtype, -b1v, b1v)
    w2 = jax.random.uniform(k3, (d_ff, d_model), dtype, -b2v, b2v)
    b2 = jax.random.uniform(k4, (d_model,), dtype, -b2v, b2v)
    return w1, b1, w2, b2


def ffn_reference(x, w1, b1, w2, b2):
    hp = jax.lax.Precision.HIGHEST
    h = jnp.maximum(jnp.dot(x, w1, precision=hp) + b1, 0.0)
    return jnp.dot(h, w2, precision=hp) + b2


if __name__ == "__main__":
    # --- Check 1: small module-sized shapes, f32 path. ---
    batch, seq, d_model, d_ff = 2, 8, 32, 64
    key = jax.random.PRNGKey(0)
    kx, kp = jax.random.split(key)
    x = jax.random.normal(kx, (batch, seq, d_model), jnp.float32)
    w1, b1, w2, b2 = init_params(kp, d_model, d_ff)

    out = jax.block_until_ready(feed_forward(x, w1, b1, w2, b2))
    ref = ffn_reference(x, w1, b1, w2, b2)
    assert out.shape == (batch, seq, d_model)
    assert jnp.allclose(out, ref, atol=2e-3, rtol=2e-3), \
        float(jnp.max(jnp.abs(out - ref)))

    # --- Check 2: tiled path (ragged M tiles, multiple d_ff reduction tiles
    #     through the f32 accumulator; triple-buffered weight slabs where legal). ---
    batch2, seq2, d_model2, d_ff2 = 2, 40, 256, 384
    kx2, kp2 = jax.random.split(jax.random.PRNGKey(1))
    x2 = jax.random.normal(kx2, (batch2, seq2, d_model2), jnp.float32)
    w1b, b1b, w2b, b2b = init_params(kp2, d_model2, d_ff2)
    out2 = jax.block_until_ready(
        feed_forward(x2, w1b, b1b, w2b, b2b, block_m=32, block_ff=128))
    ref2 = ffn_reference(x2, w1b, b1b, w2b, b2b)
    assert out2.shape == (batch2, seq2, d_model2)
    assert jnp.allclose(out2, ref2, atol=2e-2, rtol=2e-2), \
        float(jnp.max(jnp.abs(out2 - ref2)))

    # --- Check 3: bf16 operands (params stored in bf16, f32 accumulation). ---
    batch3, seq3, d_model3, d_ff3 = 2, 64, 256, 512
    kx3, kp3 = jax.random.split(jax.random.PRNGKey(2))
    x3 = jax.random.normal(kx3, (batch3, seq3, d_model3), jnp.float32)
    w1c, b1c, w2c, b2c = init_params(kp3, d_model3, d_ff3)
    x3b, w1cb, b1cb, w2cb, b2cb = (a.astype(jnp.bfloat16)
                                   for a in (x3, w1c, b1c, w2c, b2c))
    out3 = jax.block_until_ready(feed_forward(x3b, w1cb, b1cb, w2cb, b2cb))
    ref3 = ffn_reference(x3b.astype(jnp.float32), w1cb.astype(jnp.float32),
                         b1cb.astype(jnp.float32), w2cb.astype(jnp.float32),
                         b2cb.astype(jnp.float32))
    assert out3.shape == (batch3, seq3, d_model3)
    err3 = jnp.max(jnp.abs(out3.astype(jnp.float32) - ref3))
    assert jnp.allclose(out3.astype(jnp.float32), ref3, atol=4e-2, rtol=4e-2), float(err3)

    print("KERNEL_OK")
</pallas_src>

<mosaic_0001>
module attributes {stable_mosaic.version = 11 : i64} {
  func.func @ffn_kernel(%arg0: i32, %arg1: i32, %arg2: memref<16x32xf32, #tpu.memory_space<vmem>>, %arg3: memref<32x64xf32, #tpu.memory_space<vmem>>, %arg4: memref<1x64xf32, #tpu.memory_space<vmem>>, %arg5: memref<64x128xf32, #tpu.memory_space<vmem>>, %arg6: memref<1x128xf32, #tpu.memory_space<vmem>>, %arg7: memref<16x128xf32, #tpu.memory_space<vmem>>, %arg8: memref<16x128xf32, #tpu.memory_space<vmem>>) attributes {dimension_semantics = [#tpu.dimension_semantics<parallel>, #tpu.dimension_semantics<arbitrary>], iteration_bounds = array<i64: 1, 1>, scalar_prefetch = 0 : i64, scratch_operands = 1 : i64, tpu.core_type = #tpu.core_type<tc>, window_params = [{transform_indices = @transform_0, window_bounds = array<i64: 16, 32>}, {transform_indices = @transform_1, window_bounds = array<i64: 32, 64>}, {transform_indices = @transform_2, window_bounds = array<i64: 1, 64>}, {transform_indices = @transform_3, window_bounds = array<i64: 64, 128>}, {pipeline_mode = #tpu.pipeline_mode<synchronous>, transform_indices = @transform_4, window_bounds = array<i64: 1, 128>}, {transform_indices = @transform_5, window_bounds = array<i64: 16, 128>}]} {
    %c0_i32 = arith.constant 0 : i32
    %0 = arith.cmpi eq, %arg1, %c0_i32 : i32
    %1 = arith.extui %0 : i1 to i32
    %c0_i32_0 = arith.constant 0 : i32
    %2 = arith.cmpi ne, %1, %c0_i32_0 : i32
    scf.if %2 {
      %cst_16 = arith.constant 0.000000e+00 : f32
      %19 = vector.broadcast %cst_16 : f32 to vector<16x128xf32>
      %c0_17 = arith.constant 0 : index
      %c0_18 = arith.constant 0 : index
      %20 = vector.load %arg8[%c0_17, %c0_18] : memref<16x128xf32, #tpu.memory_space<vmem>>, vector<16x128xf32>
      tpu.vector_store %arg8[%c0_17, %c0_18], %19 {strides = array<i32>} : memref<16x128xf32, #tpu.memory_space<vmem>>, vector<16x128xf32>,
    } else {
    }
    %c0 = arith.constant 0 : index
    %c0_1 = arith.constant 0 : index
    %3 = vector.load %arg2[%c0, %c0_1] : memref<16x32xf32, #tpu.memory_space<vmem>>, vector<16x32xf32>
    %c0_2 = arith.constant 0 : index
    %c0_3 = arith.constant 0 : index
    %4 = vector.load %arg3[%c0_2, %c0_3] : memref<32x64xf32, #tpu.memory_space<vmem>>, vector<32x64xf32>
    %cst = arith.constant dense<0.000000e+00> : vector<16x64xf32>
    %5 = tpu.matmul %3, %4, %cst {dimension_numbers = #tpu.dot_dimension_numbers<[1], [0], [0], [1], [0, 0, 1, 1], [], []>} : vector<16x32xf32>, vector<32x64xf32>, vector<16x64xf32> -> vector<16x64xf32>
    %c0_4 = arith.constant 0 : index
    %c0_5 = arith.constant 0 : index
    %6 = vector.load %arg4[%c0_4, %c0_5] : memref<1x64xf32, #tpu.memory_space<vmem>>, vector<1x64xf32>
    %7 = vector.broadcast %6 : vector<1x64xf32> to vector<16x64xf32>
    %8 = arith.addf %5, %7 : vector<16x64xf32>
    %cst_6 = arith.constant 0.000000e+00 : f32
    %9 = vector.broadcast %cst_6 : f32 to vector<16x64xf32>
    %10 = arith.maximumf %8, %9 : vector<16x64xf32>
    %c0_7 = arith.constant 0 : index
    %c0_8 = arith.constant 0 : index
    %11 = vector.load %arg8[%c0_7, %c0_8] : memref<16x128xf32, #tpu.memory_space<vmem>>, vector<16x128xf32>
    %c0_9 = arith.constant 0 : index
    %c0_10 = arith.constant 0 : index
    %12 = vector.load %arg5[%c0_9, %c0_10] : memref<64x128xf32, #tpu.memory_space<vmem>>, vector<64x128xf32>
    %cst_11 = arith.constant dense<0.000000e+00> : vector<16x128xf32>
    %13 = tpu.matmul %10, %12, %cst_11 {dimension_numbers = #tpu.dot_dimension_numbers<[1], [0], [0], [1], [0, 0, 1, 1], [], []>} : vector<16x64xf32>, vector<64x128xf32>, vector<16x128xf32> -> vector<16x128xf32>
    %14 = arith.addf %11, %13 : vector<16x128xf32>
    %c0_12 = arith.constant 0 : index
    %c0_13 = arith.constant 0 : index
    %15 = vector.load %arg8[%c0_12, %c0_13] : memref<16x128xf32, #tpu.memory_space<vmem>>, vector<16x128xf32>
    tpu.vector_store %arg8[%c0_12, %c0_13], %14 {strides = array<i32>} : memref<16x128xf32, #tpu.memory_space<vmem>>, vector<16x128xf32>,
    %c0_i32_14 = arith.constant 0 : i32
    %16 = arith.cmpi eq, %arg1, %c0_i32_14 : i32
    %17 = arith.extui %16 : i1 to i32
    %c0_i32_15 = arith.constant 0 : i32
    %18 = arith.cmpi ne, %17, %c0_i32_15 : i32
    scf.if %18 {
      %c0_16 = arith.constant 0 : index
      %c0_17 = arith.constant 0 : index
      %19 = vector.load %arg8[%c0_16, %c0_17] : memref<16x128xf32, #tpu.memory_space<vmem>>, vector<16x128xf32>
      %c0_18 = arith.constant 0 : index
      %c0_19 = arith.constant 0 : index
      %20 = vector.load %arg6[%c0_18, %c0_19] : memref<1x128xf32, #tpu.memory_space<vmem>>, vector<1x128xf32>
      %21 = vector.broadcast %20 : vector<1x128xf32> to vector<16x128xf32>
      %22 = arith.addf %19, %21 : vector<16x128xf32>
      %c0_20 = arith.constant 0 : index
      %c0_21 = arith.constant 0 : index
      %23 = vector.load %arg7[%c0_20, %c0_21] : memref<16x128xf32, #tpu.memory_space<vmem>>, vector<16x128xf32>
      tpu.vector_store %arg7[%c0_20, %c0_21], %22 {strides = array<i32>} : memref<16x128xf32, #tpu.memory_space<vmem>>, vector<16x128xf32>,
    } else {
    }
    return
  }
  func.func @transform_0(%arg0: i32, %arg1: i32) -> (i32, i32) {
    %c0_i32 = arith.constant 0 : i32
    %c0_i32_0 = arith.constant 0 : i32
    return %arg0, %c0_i32 : i32, i32
  }
  func.func @transform_1(%arg0: i32, %arg1: i32) -> (i32, i32) {
    %c0_i32 = arith.constant 0 : i32
    %c0_i32_0 = arith.constant 0 : i32
    return %c0_i32, %arg1 : i32, i32
  }
  func.func @transform_2(%arg0: i32, %arg1: i32) -> (i32, i32) {
    %c0_i32 = arith.constant 0 : i32
    %c0_i32_0 = arith.constant 0 : i32
    return %c0_i32, %arg1 : i32, i32
  }
  func.func @transform_3(%arg0: i32, %arg1: i32) -> (i32, i32) {
    %c0_i32 = arith.constant 0 : i32
    %c0_i32_0 = arith.constant 0 : i32
    return %arg1, %c0_i32 : i32, i32
  }
  func.func @transform_4(%arg0: i32, %arg1: i32) -> (i32, i32) {
    %c0_i32 = arith.constant 0 : i32
    %c0_i32_0 = arith.constant 0 : i32
    %c0_i32_1 = arith.constant 0 : i32
    return %c0_i32, %c0_i32_0 : i32, i32
  }
  func.func @transform_5(%arg0: i32, %arg1: i32) -> (i32, i32) {
    %c0_i32 = arith.constant 0 : i32
    %c0_i32_0 = arith.constant 0 : i32
    return %arg0, %c0_i32 : i32, i32
  }
}

</mosaic_0001>

<llo_original>
// kernel: tpu_custom_call.1
$region0: #{tpu_custom_call.1}
  #allocation0 [shape = 'u32[]', space=smem, size = 0x4, offset = 0x4, fixed_abs, tag = 'smem constant byte address 0x4 - core index']
  #allocation1 [shape = 'u32[144,128]{1,0:T(1,128)}', space=vmem, size = 0x12000, scoped, tag = 'internal scratch']
  #allocation2 [shape = 'f32[16,128]{1,0:T(8,128)}', space=vmem, size = 0x2000, scoped, tag = 'scratch operand']
  %s0 = inlined_call_operand.hbm [shape: f32[16,32], index: 0, kind: input, shape index: {}]
  %s1 = inlined_call_operand.hbm [shape: f32[32,64], index: 1, kind: input, shape index: {}]
  %s2 = inlined_call_operand.vmem [shape: f32[1,64], index: 2, kind: input, shape index: {}]
  %s3 = inlined_call_operand.hbm [shape: f32[64,128], index: 3, kind: input, shape index: {}]
  %s4 = inlined_call_operand.vmem [shape: f32[1,128], index: 4, kind: input, shape index: {}]
  %s5 = inlined_call_operand.hbm [shape: f32[16,128], index: 5, kind: output, shape index: {}]
  %s6 = sld [smem:[#allocation0]]
  $region50: #{tpu_custom_call.1} parent=0
    _
  %s8 = ssub.s32 1, %s6
  %s9 = scalar_select 0, %s8, %s6
  $region1: #{tpu_custom_call.1} parent=0
    #allocation3 [shape = 'u8[8192]{0}', space=vmem, size = 0x2000, scoped, tag = 'input window, operand 0, single buffered']
    #allocation4 [shape = 's32[1]{0}', space=sflag, size = 0x4, scoped, tag = 'scoped memory for tpu_custom_call.1']
    #allocation5 [shape = 's32[1]{0}', space=sflag, size = 0x4, scoped, tag = 'scoped memory for tpu_custom_call.1']
    #allocation6 [shape = 'u8[16384]{0}', space=vmem, size = 0x4000, scoped, tag = 'input window, operand 1, single buffered']
    #allocation7 [shape = 's32[1]{0}', space=sflag, size = 0x4, scoped, tag = 'scoped memory for tpu_custom_call.1']
    #allocation8 [shape = 'u8[32768]{0}', space=vmem, size = 0x8000, scoped, tag = 'input window, operand 3, single buffered']
    #allocation9 [shape = 'u8[8192]{0}', space=vmem, size = 0x2000, scoped, tag = 'output window, operand 0, single buffered']
    %10 = vsyncpa [#allocation4], 0
    %11 = vsyncpa [#allocation7], 0
    %12 = vsyncpa [#allocation5], 0
    // Predicated region
    $region2: #{tpu_custom_call.1} parent=1 // pred_check
      _
    $region3: #{tpu_custom_call.1} parent=1 // pred_check_branch
      %14 = sbr.rel (0) target = $region5
    $region4: #{tpu_custom_call.1} parent=1 // pred_region
      %s16 = ssub.s32 256, 256
      %17 = vsyncadd [#allocation4], %s16
      %s18 = sshll.u32 [#allocation3], 4
      %s19 = int_to_ptr.vmem [resolvable:$true] %s18
      %24 = dma.hbm_to_vmem [thread:$0]  %s0, 256, %s19, [#allocation4], 128, 128, 8
    $region5: #{tpu_custom_call.1} parent=1 // pred_fallthru
      _
    // Predicated region
    $region6: #{tpu_custom_call.1} parent=1 // pred_check
      _
    $region7: #{tpu_custom_call.1} parent=1 // pred_check_branch
      %26 = sbr.rel (0) target = $region9
    $region8: #{tpu_custom_call.1} parent=1 // pred_region
      %s28 = ssub.s32 512, 512
      %29 = vsyncadd [#allocation7], %s28
      %s30 = sshll.u32 [#allocation6], 4
      %s31 = int_to_ptr.vmem [resolvable:$true] %s30
      %36 = dma.hbm_to_vmem [thread:$0]  %s1, 512, %s31, [#allocation7], 128, 128, 8
    $region9: #{tpu_custom_call.1} parent=1 // pred_fallthru
      _
    // Predicated region
    $region10: #{tpu_custom_call.1} parent=1 // pred_check
      _
    $region11: #{tpu_custom_call.1} parent=1 // pred_check_branch
      %38 = sbr.rel (0) target = $region13
    $region12: #{tpu_custom_call.1} parent=1 // pred_region
      _
    $region13: #{tpu_custom_call.1} parent=1 // pred_fallthru
      _
    // Predicated region
    $region14: #{tpu_custom_call.1} parent=1 // pred_check
      _
    $region15: #{tpu_custom_call.1} parent=1 // pred_check_branch
      %40 = sbr.rel (0) target = $region17
    $region16: #{tpu_custom_call.1} parent=1 // pred_region
      %s42 = ssub.s32 1024, 1024
      %43 = vsyncadd [#allocation7], %s42
      %s44 = sshll.u32 [#allocation8], 4
      %s45 = int_to_ptr.vmem [resolvable:$true] %s44
      %50 = dma.hbm_to_vmem [thread:$0]  %s3, 1024, %s45, [#allocation7], 128, 128, 8
    $region17: #{tpu_custom_call.1} parent=1 // pred_fallthru
      _
    // Predicated region
    $region18: #{tpu_custom_call.1} parent=1 // pred_check
      _
    $region19: #{tpu_custom_call.1} parent=1 // pred_check_branch
      %52 = sbr.rel (0) target = $region21
    $region20: #{tpu_custom_call.1} parent=1 // pred_region
      _
    $region21: #{tpu_custom_call.1} parent=1 // pred_fallthru
      _
    // Predicated region
    $region22: #{tpu_custom_call.1} parent=1 // pred_check
      _
    $region23: #{tpu_custom_call.1} parent=1 // pred_check_branch
      %54 = sbr.rel (0) target = $region25
    $region24: #{tpu_custom_call.1} parent=1 // pred_region
      %55 = dma.done [#allocation4], 256
    $region25: #{tpu_custom_call.1} parent=1 // pred_fallthru
      _
    // Predicated region
    $region26: #{tpu_custom_call.1} parent=1 // pred_check
      _
    $region27: #{tpu_custom_call.1} parent=1 // pred_check_branch
      %57 = sbr.rel (0) target = $region29
    $region28: #{tpu_custom_call.1} parent=1 // pred_region
      %58 = dma.done [#allocation7], 512
    $region29: #{tpu_custom_call.1} parent=1 // pred_fallthru
      _
    // Predicated region
    $region30: #{tpu_custom_call.1} parent=1 // pred_check
      _
    $region31: #{tpu_custom_call.1} parent=1 // pred_check_branch
      %60 = sbr.rel (0) target = $region33
    $region32: #{tpu_custom_call.1} parent=1 // pred_region
      %61 = dma.done [#allocation7], 1024
    $region33: #{tpu_custom_call.1} parent=1 // pred_fallthru
      _
    %p62 = scmp.eq.s32.totalorder 0, 0
    // Predicated region
    $region34: #{tpu_custom_call.1} parent=1 // pred_check
      %p63 = pneg %p62
    $region35: #{tpu_custom_call.1} parent=1 // pred_check_branch
      %65 = sbr.rel (%p63) target = $region37
    $region36: #{tpu_custom_call.1} parent=1 // pred_region
      %66 = vst [vmem:[#allocation2] sm:$0xff] 0.0
      %67 = vst [vmem:[#allocation2 + $0x8] sm:$0xff] 0.0
    $region37: #{tpu_custom_call.1} parent=1 // pred_fallthru
      _
    %v68 = vld [vmem:[#allocation3] sm:$0xff]
    %v69 = vld [vmem:[#allocation3 + $0x8] sm:$0xff]
    %v70 = vld [vmem:[#allocation6] sm:$0xff]
    %v71 = vld [vmem:[#allocation6 + $0x8] sm:$0xff]
    %v72 = vld [vmem:[#allocation6 + $0x10] sm:$0xff]
    %v73 = vld [vmem:[#allocation6 + $0x18] sm:$0xff]
    %v74 = vld [vmem:[%s2] sm:$0x1]
    %v76 = vlaneseq
    %v77 = vshrl.u32 %v76, 7
    %v78 = vsub.s32 0, %v77
    %v79 = vrot.slane %v74, %v78
    %vm81 = vcmask 261120
    %v83 = vsel %vm81, %v68, 0
    %v86 = vsel %vm81, %v69, 0
    %88 = vmatprep.subr.mxu0 0.0
    %89 = vmatpush1.msra.mxu0 %v70
    %90 = vmatprep.subr.mxu0 0.0
    %91 = vmatpush1.msra.mxu0 %v71
    %92 = vmatprep.subr.mxu0 0.0
    %93 = vmatpush1.msra.mxu0 %v72
    %94 = vmatprep.subr.mxu0 0.0
    %95 = vmatpush1.msra.mxu0 %v73
    %96 = vmatprep.subr.mxu0 0.0
    %97 = vmatpush1.msra.mxu0 0.0
    %98 = vmatprep.subr.mxu0 0.0
    %99 = vmatpush1.msra.mxu0 0.0
    %100 = vmatprep.subr.mxu0 0.0
    %101 = vmatpush1.msra.mxu0 0.0
    %102 = vmatprep.subr.mxu0 0.0
    %103 = vmatpush1.msra.mxu0 0.0
    %104 = vmatprep.subr.mxu0 0.0
    %105 = vmatpush1.msra.mxu0 0.0
    %106 = vmatprep.subr.mxu0 0.0
    %107 = vmatpush1.msra.mxu0 0.0
    %108 = vmatprep.subr.mxu0 0.0
    %109 = vmatpush1.msra.mxu0 0.0
    %110 = vmatprep.subr.mxu0 0.0
    %111 = vmatpush1.msra.mxu0 0.0
    %112 = vmatprep.subr.mxu0 0.0
    %113 = vmatpush1.msra.mxu0 0.0
    %114 = vmatprep.subr.mxu0 0.0
    %115 = vmatpush1.msra.mxu0 0.0
    %116 = vmatprep.subr.mxu0 0.0
    %117 = vmatpush1.msra.mxu0 0.0
    %118 = vmatprep.subr.mxu0 0.0
    %119 = vmatpush1.msra.mxu0 0.0
    %120 = vmatprep.subr.mxu0 0.0
    %121 = vmatpush1.msra.mxu0 0.0
    %122 = vmatprep.subr.mxu0 0.0
    %123 = vmatpush1.msra.mxu0 0.0
    %124 = vmatprep.subr.mxu0 0.0
    %125 = vmatpush1.msra.mxu0 0.0
    %126 = vmatprep.subr.mxu0 0.0
    %127 = vmatpush1.msra.mxu0 0.0
    %128 = vmatprep.subr.mxu0 0.0
    %129 = vmatpush1.msra.mxu0 0.0
    %130 = vmatprep.subr.mxu0 0.0
    %131 = vmatpush1.msra.mxu0 0.0
    %132 = vmatprep.subr.mxu0 0.0
    %133 = vmatpush1.msra.mxu0 0.0
    %134 = vmatprep.subr.mxu0 0.0
    %135 = vmatpush1.msra.mxu0 0.0
    %136 = vmatprep.subr.mxu0 0.0
    %137 = vmatpush1.msra.mxu0 0.0
    %138 = vmatprep.subr.mxu0 0.0
    %139 = vmatpush1.msra.mxu0 0.0
    %140 = vmatprep.subr.mxu0 0.0
    %141 = vmatpush1.msra.mxu0 0.0
    %142 = vmatprep.subr.mxu0 0.0
    %143 = vmatpush1.msra.mxu0 0.0
    %144 = vmatprep.subr.mxu0 0.0
    %145 = vmatpush1.msra.mxu0 0.0
    %146 = vmatprep.subr.mxu0 0.0
    %147 = vmatpush1.msra.mxu0 0.0
    %148 = vmatprep.subr.mxu0 0.0
    %149 = vmatpush1.msra.mxu0 0.0
    %150 = vmatprep.subr.mxu0 0.0
    %151 = vmatpush1.msra.mxu0 0.0
    %152 = vmatprep.mubr.f32.mxu0 0.0
    %153 = vmatmul.mubr.f32.gmra.mrb[0].mxu0 %v83
    %v154 = vpop.f32.mrb[0].mxu0
    %v155 = vadd.f32 %v79, %v154
    %v156 = vpop.f32.mrb[0].mxu0
    %157 = vmatprep.mubr.f32.mxu0 0.0
    %158 = vmatmul.mubr.f32.gmra.mrb[0].mxu0 %v86
    %v159 = vpop.f32.mrb[0].mxu0
    %v160 = vadd.f32 %v79, %v159
    %v161 = vpop.f32.mrb[0].mxu0
    %162 = vdwg.mxu0
    %v163 = vmax.f32 %v155, 0.0
    %v164 = vmax.f32 %v160, 0.0
    %v165 = vld [vmem:[#allocation2] sm:$0xff]
    %v166 = vld [vmem:[#allocation2 + $0x8] sm:$0xff]
    %v167 = vld [vmem:[#allocation8] sm:$0xff]
    %v168 = vld [vmem:[#allocation8 + $0x8] sm:$0xff]
    %v169 = vld [vmem:[#allocation8 + $0x10] sm:$0xff]
    %v170 = vld [vmem:[#allocation8 + $0x18] sm:$0xff]
    %v171 = vld [vmem:[#allocation8 + $0x20] sm:$0xff]
    %v172 = vld [vmem:[#allocation8 + $0x28] sm:$0xff]
    %v173 = vld [vmem:[#allocation8 + $0x30] sm:$0xff]
    %v174 = vld [vmem:[#allocation8 + $0x38] sm:$0xff]
    %vm175 = vcmask 523264
    %v177 = vsel %vm175, %v163, 0
    %v180 = vsel %vm175, %v164, 0
    %182 = vmatprep.subr.mxu0 0.0
    %183 = vmatpush1.msra.mxu0 %v167
    %184 = vmatprep.subr.mxu0 0.0
    %185 = vmatpush1.msra.mxu0 %v168
    %186 = vmatprep.subr.mxu0 0.0
    %187 = vmatpush1.msra.mxu0 %v169
    %188 = vmatprep.subr.mxu0 0.0
    %189 = vmatpush1.msra.mxu0 %v170
    %190 = vmatprep.subr.mxu0 0.0
    %191 = vmatpush1.msra.mxu0 %v171
    %192 = vmatprep.subr.mxu0 0.0
    %193 = vmatpush1.msra.mxu0 %v172
    %194 = vmatprep.subr.mxu0 0.0
    %195 = vmatpush1.msra.mxu0 %v173
    %196 = vmatprep.subr.mxu0 0.0
    %197 = vmatpush1.msra.mxu0 %v174
    %198 = vmatprep.subr.mxu0 0.0
    %199 = vmatpush1.msra.mxu0 0.0
    %200 = vmatprep.subr.mxu0 0.0
    %201 = vmatpush1.msra.mxu0 0.0
    %202 = vmatprep.subr.mxu0 0.0
    %203 = vmatpush1.msra.mxu0 0.0
    %204 = vmatprep.subr.mxu0 0.0
    %205 = vmatpush1.msra.mxu0 0.0
    %206 = vmatprep.subr.mxu0 0.0
    %207 = vmatpush1.msra.mxu0 0.0
    %208 = vmatprep.subr.mxu0 0.0
    %209 = vmatpush1.msra.mxu0 0.0
    %210 = vmatprep.subr.mxu0 0.0
    %211 = vmatpush1.msra.mxu0 0.0
    %212 = vmatprep.subr.mxu0 0.0
    %213 = vmatpush1.msra.mxu0 0.0
    %214 = vmatprep.subr.mxu0 0.0
    %215 = vmatpush1.msra.mxu0 0.0
    %216 = vmatprep.subr.mxu0 0.0
    %217 = vmatpush1.msra.mxu0 0.0
    %218 = vmatprep.subr.mxu0 0.0
    %219 = vmatpush1.msra.mxu0 0.0
    %220 = vmatprep.subr.mxu0 0.0
    %221 = vmatpush1.msra.mxu0 0.0
    %222 = vmatprep.subr.mxu0 0.0
    %223 = vmatpush1.msra.mxu0 0.0
    %224 = vmatprep.subr.mxu0 0.0
    %225 = vmatpush1.msra.mxu0 0.0
    %226 = vmatprep.subr.mxu0 0.0
    %227 = vmatpush1.msra.mxu0 0.0
    %228 = vmatprep.subr.mxu0 0.0
    %229 = vmatpush1.msra.mxu0 0.0
    %230 = vmatprep.subr.mxu0 0.0
    %231 = vmatpush1.msra.mxu0 0.0
    %232 = vmatprep.subr.mxu0 0.0
    %233 = vmatpush1.msra.mxu0 0.0
    %234 = vmatprep.subr.mxu0 0.0
    %235 = vmatpush1.msra.mxu0 0.0
    %236 = vmatprep.subr.mxu0 0.0
    %237 = vmatpush1.msra.mxu0 0.0
    %238 = vmatprep.subr.mxu0 0.0
    %239 = vmatpush1.msra.mxu0 0.0
    %240 = vmatprep.subr.mxu0 0.0
    %241 = vmatpush1.msra.mxu0 0.0
    %242 = vmatprep.subr.mxu0 0.0
    %243 = vmatpush1.msra.mxu0 0.0
    %244 = vmatprep.subr.mxu0 0.0
    %245 = vmatpush1.msra.mxu0 0.0
    %246 = vmatprep.mubr.f32.mxu0 0.0
    %247 = vmatmul.mubr.f32.gmra.mrb[0].mxu0 %v177
    %v248 = vpop.f32.mrb[0].mxu0
    %v249 = vadd.f32 0.0, %v248
    %v250 = vpop.f32.mrb[0].mxu0
    %251 = vmatprep.mubr.f32.mxu0 0.0
    %252 = vmatmul.mubr.f32.gmra.mrb[0].mxu0 %v180
    %v253 = vpop.f32.mrb[0].mxu0
    %v254 = vadd.f32 0.0, %v253
    %v255 = vpop.f32.mrb[0].mxu0
    %256 = vdwg.mxu0
    %v257 = vadd.f32 %v165, %v249
    %v258 = vadd.f32 %v166, %v254
    %259 = vst [vmem:[#allocation2] sm:$0xff] %v257
    %260 = vst [vmem:[#allocation2 + $0x8] sm:$0xff] %v258
    // Predicated region
    $region38: #{tpu_custom_call.1} parent=1 // pred_check
      %p261 = pneg %p62
    $region39: #{tpu_custom_call.1} parent=1 // pred_check_branch
      %263 = sbr.rel (%p261) target = $region41
    $region40: #{tpu_custom_call.1} parent=1 // pred_region
      %v264 = vld [vmem:[#allocation2] sm:$0xff]
      %v265 = vld [vmem:[#allocation2 + $0x8] sm:$0xff]
      %v266 = vld [vmem:[%s4] sm:$0x1]
      %v268 = vlaneseq
      %v269 = vshrl.u32 %v268, 7
      %v270 = vsub.s32 0, %v269
      %v271 = vrot.slane %v266, %v270
      %v273 = vadd.f32 %v264, %v271
      %v274 = vadd.f32 %v265, %v271
      %275 = vst [vmem:[#allocation9] sm:$0xff] %v273
      %276 = vst [vmem:[#allocation9 + $0x8] sm:$0xff] %v274
    $region41: #{tpu_custom_call.1} parent=1 // pred_fallthru
      _
    // Predicated region
    $region42: #{tpu_custom_call.1} parent=1 // pred_check
      _
    $region43: #{tpu_custom_call.1} parent=1 // pred_check_branch
      %278 = sbr.rel (0) target = $region45
    $region44: #{tpu_custom_call.1} parent=1 // pred_region
      %s280 = ssub.s32 256, 256
      %281 = vsyncadd [#allocation5], %s280
      %s282 = sshll.u32 [#allocation9], 4
      %s283 = int_to_ptr.vmem [resolvable:$true] %s282
      %288 = dma.vmem_to_hbm [thread:$0]  %s283, 256, %s5, [#allocation5], 128, 128, 8
    $region45: #{tpu_custom_call.1} parent=1 // pred_fallthru
      _
    // Predicated region
    $region46: #{tpu_custom_call.1} parent=1 // pred_check
      _
    $region47: #{tpu_custom_call.1} parent=1 // pred_check_branch
      %290 = sbr.rel (0) target = $region49
    $region48: #{tpu_custom_call.1} parent=1 // pred_region
      %291 = dma.done [#allocation5], 256
    $region49: #{tpu_custom_call.1} parent=1 // pred_fallthru
      _
    %292 = vsyncpa [#allocation4], 1
    %293 = vsyncpa [#allocation7], 1
    %294 = vsyncpa [#allocation5], 1

</llo_original>
